<compile_context>
chip_gen: v5e
topology: v5e:2x2
jax: 0.10.0
libtpu: 0.0.40
codegen_flags: <defaults>
</compile_context>

<pallas_src>
import math

import jax
import jax.numpy as jnp
from jax.experimental import pallas as pl
from jax.experimental.pallas import tpu as pltpu


# ----------------------------- kernel -----------------------------

def pe_add_kernel(x_ref, pe_ref, o_ref):
    """One batch row: out[s, d] = x[s, d] + pe[s, d]."""
    o_ref[0] = x_ref[0] + pe_ref[...]


# ----------------------------- wrapper -----------------------------

def make_positional_encoding(d_model, max_len=100):
    """Identical construction to the PyTorch module's registered buffer (even d_model)."""
    pos = jnp.arange(max_len, dtype=jnp.float32)[:, None]
    div = jnp.exp(jnp.arange(0, d_model, 2, dtype=jnp.float32)
                  * (-math.log(10000.0) / d_model))
    pe = jnp.zeros((max_len, d_model), jnp.float32)
    pe = pe.at[:, 0::2].set(jnp.sin(pos * div))
    pe = pe.at[:, 1::2].set(jnp.cos(pos * div))
    return pe                                    # (max_len, d_model)


def positional_encoding_forward(x, pe):
    """x: (B, S, D) float32, pe: (max_len, D) float32 -> (B, S, D) float32."""
    B, S, D = x.shape
    pe_s = pe[:S]                                # static slice, folded at trace time

    return pl.pallas_call(
        pe_add_kernel,
        out_shape=jax.ShapeDtypeStruct((B, S, D), x.dtype),
        grid=(B,),
        in_specs=[
            pl.BlockSpec((1, S, D), lambda b: (b, 0, 0)),   # per-batch activation row
            pl.BlockSpec((S, D), lambda b: (0, 0)),         # pe buffer, shared by all rows
        ],
        out_specs=pl.BlockSpec((1, S, D), lambda b: (b, 0, 0)),
        compiler_params=pltpu.CompilerParams(
            dimension_semantics=("parallel",)),             # megacore-friendly on v7x
    )(x, pe_s)


# ----------------------------- main -----------------------------

if __name__ == "__main__":
    D_MODEL = 32
    MAX_LEN = 100
    B, S = 2, 8

    key = jax.random.PRNGKey(0)
    x = jax.random.normal(key, (B, S, D_MODEL), dtype=jnp.float32)
    pe = make_positional_encoding(D_MODEL, MAX_LEN)

    fwd = jax.jit(positional_encoding_forward)
    out = jax.block_until_ready(fwd(x, pe))

    # pure-JAX reference check (same semantics as the PyTorch forward)
    ref = x + pe[None, :S, :]
    assert out.shape == (B, S, D_MODEL)
    assert bool(jnp.all(jnp.isfinite(out)))
    assert bool(jnp.allclose(out, ref, atol=1e-6, rtol=1e-6))

    print("KERNEL_OK")
</pallas_src>

<mosaic_0001>
module attributes {stable_mosaic.version = 11 : i64} {
  func.func @pe_add_kernel(%arg0: i32, %arg1: memref<1x8x32xf32, #tpu.memory_space<vmem>>, %arg2: memref<8x32xf32, #tpu.memory_space<vmem>>, %arg3: memref<1x8x32xf32, #tpu.memory_space<vmem>>) attributes {dimension_semantics = [#tpu.dimension_semantics<parallel>], iteration_bounds = array<i64: 2>, scalar_prefetch = 0 : i64, scratch_operands = 0 : i64, tpu.core_type = #tpu.core_type<tc>, window_params = [{transform_indices = @transform_0, window_bounds = array<i64: 1, 8, 32>}, {pipeline_mode = #tpu.pipeline_mode<synchronous>, transform_indices = @transform_1, window_bounds = array<i64: 8, 32>}, {transform_indices = @transform_2, window_bounds = array<i64: 1, 8, 32>}]} {
    %c0 = arith.constant 0 : index
    %c0_0 = arith.constant 0 : index
    %c0_1 = arith.constant 0 : index
    %0 = vector.load %arg1[%c0, %c0_0, %c0_1] : memref<1x8x32xf32, #tpu.memory_space<vmem>>, vector<1x8x32xf32>
    %1 = vector.shape_cast %0 : vector<1x8x32xf32> to vector<8x32xf32>
    %c0_2 = arith.constant 0 : index
    %c0_3 = arith.constant 0 : index
    %2 = vector.load %arg2[%c0_2, %c0_3] : memref<8x32xf32, #tpu.memory_space<vmem>>, vector<8x32xf32>
    %3 = arith.addf %1, %2 : vector<8x32xf32>
    %c0_4 = arith.constant 0 : index
    %c0_5 = arith.constant 0 : index
    %c0_6 = arith.constant 0 : index
    %4 = vector.load %arg3[%c0_4, %c0_5, %c0_6] : memref<1x8x32xf32, #tpu.memory_space<vmem>>, vector<1x8x32xf32>
    %5 = vector.shape_cast %4 : vector<1x8x32xf32> to vector<8x32xf32>
    %6 = vector.shape_cast %3 : vector<8x32xf32> to vector<1x8x32xf32>
    tpu.vector_store %arg3[%c0_4, %c0_5, %c0_6], %6 {strides = array<i32>} : memref<1x8x32xf32, #tpu.memory_space<vmem>>, vector<1x8x32xf32>,
    return
  }
  func.func @transform_0(%arg0: i32) -> (i32, i32, i32) {
    %c0_i32 = arith.constant 0 : i32
    %c0_i32_0 = arith.constant 0 : i32
    %c0_i32_1 = arith.constant 0 : i32
    return %arg0, %c0_i32, %c0_i32_0 : i32, i32, i32
  }
  func.func @transform_1(%arg0: i32) -> (i32, i32) {
    %c0_i32 = arith.constant 0 : i32
    %c0_i32_0 = arith.constant 0 : i32
    %c0_i32_1 = arith.constant 0 : i32
    return %c0_i32, %c0_i32_0 : i32, i32
  }
  func.func @transform_2(%arg0: i32) -> (i32, i32, i32) {
    %c0_i32 = arith.constant 0 : i32
    %c0_i32_0 = arith.constant 0 : i32
    %c0_i32_1 = arith.constant 0 : i32
    return %arg0, %c0_i32, %c0_i32_0 : i32, i32, i32
  }
}

</mosaic_0001>

<llo_original>
// kernel: positional_encoding_forward.1
$region0: #{positional_encoding_forward.1}
  #allocation0 [shape = 'u32[]', space=smem, size = 0x4, offset = 0x4, fixed_abs, tag = 'smem constant byte address 0x4 - core index']
  #allocation1 [shape = 'u32[72,128]{1,0:T(1,128)}', space=vmem, size = 0x9000, scoped, tag = 'internal scratch']
  %s0 = inlined_call_operand.vmem [shape: f32[2,8,32], index: 0, kind: input, shape index: {}]
  %s1 = inlined_call_operand.vmem [shape: f32[8,32], index: 1, kind: input, shape index: {}]
  %s2 = inlined_call_operand.hbm [shape: f32[2,8,32], index: 2, kind: output, shape index: {}]
  %s3 = sld [smem:[#allocation0]]
  $region41: #{positional_encoding_forward.1} parent=0
    _
  %s5 = ssub.s32 1, %s3
  %s6 = scalar_select 0, %s5, %s3
  $region1: #{positional_encoding_forward.1} parent=0
    #allocation2 [shape = 'u8[8192]{0}', space=vmem, size = 0x2000, scoped, tag = 'output window, operand 0']
    #allocation3 [shape = 's32[2]{0}', space=sflag, size = 0x8, scoped, tag = 'scoped memory for positional_encoding_forward.1']
    %7 = vsyncpa [#allocation3], 0
    %s8 = scalar_lea.sflag [#allocation3], 1
    %9 = vsyncpa %s8, 0
    loop: start=0, step=1, limit=4
    $region2: #{positional_encoding_forward.1} parent=1 // loop_pre_header
      _
    $region3: #{positional_encoding_forward.1} parent=1 // loop_header
      %s11 = sphi 0, %s15
      %p12 = scmp.ge.s32.totalorder %s11, 4
      %s21 = sphi 0, %s23
      %s24 = sphi 0, %s21
      %s25 = sphi 0, %s24
      %s41 = sphi 0, %s25
      %s45 = sphi 0, %s45
      %s47 = sphi 0, %s45
      %s48 = sphi 0, %s47
      %s62 = sphi 0, %s48
      %s68 = sphi 0, %s70
      %s71 = sphi 0, %s68
      %s72 = sphi 0, %s71
      %s88 = sphi 0, %s72
    $region4: #{positional_encoding_forward.1} parent=1 // loop_header_branch
      %14 = sbr.rel (%p12) target = $region8
    $region5: #{positional_encoding_forward.1} parent=1 // loop_body
      %s16 = ssub.s32 %s11, 1
      %s17 = ssub.s32 %s11, 2
      %s18 = sadd.s32 %s11, 1
      %s19 = ssub.s32 %s11, %s18
      %p20 = scmp.eq.s32.totalorder %s19, 0
      %s22 = sadd.s32 %s21, 1
      %s23 = scalar_select %p20, %s21, %s22
      %p26 = pneg %p20
      %p27 = scmp.eq.s32.totalorder %s11, 1
      %p28 = por %p26, %p27
      %p29 = scmp.ne.s32.totalorder %s21, %s24
      %p30 = scmp.eq.s32.totalorder %s11, 0
      %p31 = por %p29, %p30
      %p32 = scmp.ne.s32.totalorder %s21, %s24
      %p33 = scmp.eq.s32.totalorder %s16, 1
      %p34 = por %p32, %p33
      %p35 = scmp.ne.s32.totalorder %s24, %s25
      %p36 = scmp.eq.s32.totalorder %s16, 0
      %p37 = por %p35, %p36
      %p38 = scmp.ne.s32.totalorder %s24, %s25
      %p39 = scmp.eq.s32.totalorder %s17, 1
      %p40 = por %p38, %p39
      %p42 = scmp.ne.s32.totalorder %s25, %s41
      %p43 = scmp.eq.s32.totalorder %s17, 0
      %p44 = por %p42, %p43
      %s46 = sadd.s32 %s45, 1
      %p49 = scmp.eq.s32.totalorder %s11, 1
      %p50 = scmp.ne.s32.totalorder %s45, %s47
      %p51 = scmp.eq.s32.totalorder %s11, 0
      %p52 = por %p50, %p51
      %p53 = scmp.ne.s32.totalorder %s45, %s47
      %p54 = scmp.eq.s32.totalorder %s16, 1
      %p55 = por %p53, %p54
      %p56 = scmp.ne.s32.totalorder %s47, %s48
      %p57 = scmp.eq.s32.totalorder %s16, 0
      %p58 = por %p56, %p57
      %p59 = scmp.ne.s32.totalorder %s47, %s48
      %p60 = scmp.eq.s32.totalorder %s17, 1
      %p61 = por %p59, %p60
      %p63 = scmp.ne.s32.totalorder %s48, %s62
      %p64 = scmp.eq.s32.totalorder %s17, 0
      %p65 = por %p63, %p64
      %s66 = ssub.s32 %s11, %s18
      %p67 = scmp.eq.s32.totalorder %s66, 0
      %s69 = sadd.s32 %s68, 1
      %s70 = scalar_select %p67, %s68, %s69
      %p73 = pneg %p67
      %p74 = scmp.eq.s32.totalorder %s11, 1
      %p75 = por %p73, %p74
      %p76 = scmp.ne.s32.totalorder %s68, %s71
      %p77 = scmp.eq.s32.totalorder %s11, 0
      %p78 = por %p76, %p77
      %p79 = scmp.ne.s32.totalorder %s68, %s71
      %p80 = scmp.eq.s32.totalorder %s16, 1
      %p81 = por %p79, %p80
      %p82 = scmp.ne.s32.totalorder %s71, %s72
      %p83 = scmp.eq.s32.totalorder %s16, 0
      %p84 = por %p82, %p83
      %p85 = scmp.ne.s32.totalorder %s71, %s72
      %p86 = scmp.eq.s32.totalorder %s17, 1
      %p87 = por %p85, %p86
      %p89 = scmp.ne.s32.totalorder %s72, %s88
      %p90 = scmp.eq.s32.totalorder %s17, 0
      %p91 = por %p89, %p90
      %p92 = scmp.le.s32.totalorder 1, %s11
      %p93 = scmp.lt.s32.totalorder %s11, 3
      %p94 = pnand %p92, %p93
      %p95 = pneg %p94
      // Predicated region
      $region9: #{positional_encoding_forward.1} parent=5 // pred_check
        _
      $region10: #{positional_encoding_forward.1} parent=5 // pred_check_branch
        %97 = sbr.rel (%p94) target = $region12
      $region11: #{positional_encoding_forward.1} parent=5 // pred_region
        %s98 = ssub.s32 %s11, 1
        // Predicated region
        $region13: #{positional_encoding_forward.1} parent=11 // pred_check
          %p99 = pneg %p58
        $region14: #{positional_encoding_forward.1} parent=11 // pred_check_branch
          %101 = sbr.rel (%p99) target = $region16
        $region15: #{positional_encoding_forward.1} parent=11 // pred_region
          _
        $region16: #{positional_encoding_forward.1} parent=11 // pred_fallthru
          _
      $region12: #{positional_encoding_forward.1} parent=5 // pred_fallthru
        _
      %p102 = scmp.lt.s32.totalorder %s11, 2
      // Predicated region
      $region17: #{positional_encoding_forward.1} parent=5 // pred_check
        %p103 = pneg %p102
      $region18: #{positional_encoding_forward.1} parent=5 // pred_check_branch
        %105 = sbr.rel (%p103) target = $region20
      $region19: #{positional_encoding_forward.1} parent=5 // pred_region
        // Predicated region
        $region21: #{positional_encoding_forward.1} parent=19 // pred_check
          %p106 = pneg %p31
        $region22: #{positional_encoding_forward.1} parent=19 // pred_check_branch
          %108 = sbr.rel (%p106) target = $region24
        $region23: #{positional_encoding_forward.1} parent=19 // pred_region
          %p109 = scmp.lt.s32.totalorder %s11, 1
          %s110 = scalar_select %p109, %s11, 1
          %s111 = smul.addr %s110, 8
          %s112 = scalar_lea.vmem %s0, %s111
        $region24: #{positional_encoding_forward.1} parent=19 // pred_fallthru
          _
      $region20: #{positional_encoding_forward.1} parent=5 // pred_fallthru
        _
      %p113 = scmp.le.s32.totalorder 1, %s11
      %p114 = scmp.lt.s32.totalorder %s11, 3
      %p115 = pnand %p113, %p114
      %p116 = pneg %p115
      // Predicated region
      $region25: #{positional_encoding_forward.1} parent=5 // pred_check
        _
      $region26: #{positional_encoding_forward.1} parent=5 // pred_check_branch
        %118 = sbr.rel (%p115) target = $region28
      $region27: #{positional_encoding_forward.1} parent=5 // pred_region
        %s119 = ssub.s32 %s11, 1
        %p120 = scmp.lt.s32.totalorder %s16, 1
        %s121 = scalar_select %p120, %s16, 1
        %s122 = smul.addr %s121, 8
        %s123 = scalar_lea.vmem %s0, %s122
        %p124 = pneg %p37
        %p125 = pneg %p34
        %p126 = pneg %p58
        %p127 = pneg %p55
        %p128 = pneg %p84
        %p129 = pneg %p81
        %s130 = sand.u32 %s71, 1
        %s131 = scalar_lea.sflag [#allocation3], %s130
        %s132 = sand.u32 %s71, 1
        %s133 = smul.addr %s132, 8
        %s134 = scalar_lea.vmem [#allocation2], %s133
        %p135 = scmp.lt.s32.totalorder %s16, 1
        %s136 = scalar_select %p135, %s16, 1
        %s137 = smul.addr %s136, 8
        %s138 = scalar_lea.vmem %s0, %s137
        %v139 = vld [vmem:[%s138] sm:$0xff]
        %v140 = vld [vmem:[%s1] sm:$0xff]
        %v141 = vadd.f32 %v139, %v140
        %vm142 = vcmask 261120
        %143 = vst.msk [vmem:[%s134] sm:$0xff] %vm142, %v141
        %s144 = sand.u32 %s71, 1
        %s145 = scalar_lea.sflag [#allocation3], %s144
        %s146 = sand.u32 %s71, 1
        %s147 = smul.addr %s146, 8
        %s148 = scalar_lea.vmem [#allocation2], %s147
        // Predicated region
        $region29: #{positional_encoding_forward.1} parent=27 // pred_check
          %p149 = pneg %p81
        $region30: #{positional_encoding_forward.1} parent=27 // pred_check_branch
          %151 = sbr.rel (%p149) target = $region32
        $region31: #{positional_encoding_forward.1} parent=27 // pred_region
          %153 = vsyncadd %s145, 0
          %s154 = smul.addr %s16, 8
          %s155 = scalar_lea.hbm %s2, %s154
          %s157 = sshll.u32 %s148, 4
          %s158 = int_to_ptr.vmem [resolvable:$true] %s157
          %s159 = sshll.u32 %s155, 4
          %s160 = int_to_ptr.hbm [resolvable:$true] %s159
          %162 = dma.vmem_to_hbm [thread:$0]  %s158, 128, %s160, %s145
        $region32: #{positional_encoding_forward.1} parent=27 // pred_fallthru
          _
      $region28: #{positional_encoding_forward.1} parent=5 // pred_fallthru
        _
      %p163 = scmp.le.s32.totalorder 2, %s11
      // Predicated region
      $region33: #{positional_encoding_forward.1} parent=5 // pred_check
        %p164 = pneg %p163
      $region34: #{positional_encoding_forward.1} parent=5 // pred_check_branch
        %166 = sbr.rel (%p164) target = $region36
      $region35: #{positional_encoding_forward.1} parent=5 // pred_region
        %s167 = ssub.s32 %s11, 2
        // Predicated region
        $region37: #{positional_encoding_forward.1} parent=35 // pred_check
          %p168 = pneg %p87
        $region38: #{positional_encoding_forward.1} parent=35 // pred_check_branch
          %170 = sbr.rel (%p168) target = $region40
        $region39: #{positional_encoding_forward.1} parent=35 // pred_region
          %s171 = sand.u32 %s72, 1
          %s172 = scalar_lea.sflag [#allocation3], %s171
          %s173 = sand.u32 %s72, 1
          %s174 = smul.addr %s173, 8
          %s175 = scalar_lea.vmem [#allocation2], %s174
          %177 = dma.done %s172, 128
        $region40: #{positional_encoding_forward.1} parent=35 // pred_fallthru
          _
      $region36: #{positional_encoding_forward.1} parent=5 // pred_fallthru
        _
    $region6: #{positional_encoding_forward.1} parent=1 // loop_footer
      %s15 = sadd.s32 1, %s11
    $region7: #{positional_encoding_forward.1} parent=1 // loop_footer_branch
      %10 = sbr.rel target = $region3
    $region8: #{positional_encoding_forward.1} parent=1 // loop_exit
      _
    %178 = vsyncpa [#allocation3], 1
    %s179 = scalar_lea.sflag [#allocation3], 1
    %180 = vsyncpa %s179, 1

</llo_original>
